<compile_context>
chip_gen: v7x
topology: tpu7x:2x2x1
jax: 0.10.0
libtpu: 0.0.40
codegen_flags: <defaults>
</compile_context>

<pallas_src>
import functools

import jax
import jax.numpy as jnp
from jax.experimental import pallas as pl
from jax.experimental.pallas import tpu as pltpu


def _round_up(x, m):
    return (x + m - 1) // m * m


# ~2 MiB per input tile (see perf notes above).
_TILE_BYTES = 2 << 20


def _choose_blocks(rows, cols, itemsize):
    """Pick (row_block, lane_tile).

    row_block is a multiple of 8 (or the full extent when rows < 8);
    lane_tile is a multiple of 128 (or the full extent when cols < 128).
    Tail blocks over-cover the array and are masked inside the kernel, so no
    host-side padding / extra HBM traffic is ever needed.
    """
    if rows < 8:
        row_block = rows
    else:
        max_rb = (rows // 8) * 8
        # Roughly half the rows so the leading "parallel" grid axis can shard
        # across the two v7x TensorCores; capped at 256 sublanes.
        half = _round_up((rows + 1) // 2, 8)
        row_block = min(256, half, max_rb)

    if cols < 128:
        lane_tile = cols
    else:
        max_lt = (cols // 128) * 128
        budget = max(128, (_TILE_BYTES // (row_block * itemsize)) // 128 * 128)
        lane_tile = min(max_lt, budget)
    return row_block, lane_tile


def _make_l1_sum_kernel(rows, cols, row_block, lane_tile, acc_rows):
    need_row_mask = (rows % row_block) != 0
    need_col_mask = (cols % lane_tile) != 0
    groups = row_block // acc_rows  # >= 1

    def kernel(hr_ref, ref_ref, out_ref, acc_ref):
        j = pl.program_id(1)

        @pl.when(j == 0)
        def _():
            acc_ref[...] = jnp.zeros_like(acc_ref)

        d = jnp.abs(hr_ref[...].astype(jnp.float32)
                    - ref_ref[...].astype(jnp.float32))

        # Mask tail blocks (grid over-covers; out-of-bounds data unspecified).
        if need_row_mask or need_col_mask:
            i = pl.program_id(0)
            valid = None
            if need_row_mask:
                rid = i * row_block + jax.lax.broadcasted_iota(
                    jnp.int32, d.shape, 0)
                valid = rid < rows
            if need_col_mask:
                cid = j * lane_tile + jax.lax.broadcasted_iota(
                    jnp.int32, d.shape, 1)
                cmask = cid < cols
                valid = cmask if valid is None else (valid & cmask)
            d = jnp.where(valid, d, 0.0)

        # Fold sublane groups into a small (acc_rows, lane_tile) accumulator
        # with cheap VPU adds; the reshape is layout-preserving
        # ((row_block, L) -> (groups, 8, L) keeps the (8, 128) tiling).
        if groups > 1:
            acc_ref[...] += jnp.sum(
                d.reshape(groups, acc_rows, lane_tile), axis=0)
        else:
            acc_ref[...] += d

        @pl.when(j == pl.num_programs(1) - 1)
        def _():
            out_ref[...] = jnp.full(out_ref.shape, jnp.sum(acc_ref[...]),
                                    dtype=out_ref.dtype)

    return kernel


def _l1_sum(hr2, ref2):
    """sum(|hr2 - ref2|) over a 2-D (rows, cols) slab via a Pallas kernel."""
    rows, cols = hr2.shape
    itemsize = max(hr2.dtype.itemsize, ref2.dtype.itemsize)
    row_block, lane_tile = _choose_blocks(rows, cols, itemsize)
    acc_rows = 8 if row_block % 8 == 0 else row_block
    grid_rows = pl.cdiv(rows, row_block)
    grid_cols = pl.cdiv(cols, lane_tile)

    kernel = _make_l1_sum_kernel(rows, cols, row_block, lane_tile, acc_rows)

    partials = pl.pallas_call(
        kernel,
        out_shape=jax.ShapeDtypeStruct((grid_rows, 8, 128), jnp.float32),
        grid=(grid_rows, grid_cols),
        in_specs=[
            pl.BlockSpec((row_block, lane_tile), lambda i, j: (i, j)),
            pl.BlockSpec((row_block, lane_tile), lambda i, j: (i, j)),
        ],
        out_specs=pl.BlockSpec((1, 8, 128), lambda i, j: (i, 0, 0)),
        scratch_shapes=[pltpu.VMEM((acc_rows, lane_tile), jnp.float32)],
        compiler_params=pltpu.CompilerParams(
            dimension_semantics=("parallel", "arbitrary")),
    )(hr2, ref2)

    # One scalar partial per row chunk (stored lane-dense); tiny host-side sum.
    return jnp.sum(partials[:, 0, 0])


@functools.partial(jax.jit, static_argnames=("loss_weight",))
def hr_loss_forward(raw, ref, hr, cc, enc, loss_weight=1.0):
    """Pallas-backed HRLoss.forward(raw, ref, hr, cc, enc)."""
    # EmptyLoss branches (exact: contribute zero).
    ccloss = jnp.float32(0.0)
    encloss = jnp.float32(0.0)

    # ---- HRLossV1_0: mean(|hr - ref|) * loss_weight, reduction in-kernel ----
    n, c, h, w = hr.shape
    rows, cols = n * c, h * w
    hr2 = hr.reshape(rows, cols)      # pure reshape, no copy/transpose
    ref2 = ref.reshape(rows, cols)

    total_abs = _l1_sum(hr2, ref2)
    hrloss = jnp.float32(loss_weight) * total_abs / jnp.float32(rows * cols)

    return ccloss + hrloss + encloss


if __name__ == "__main__":
    key = jax.random.PRNGKey(0)
    k_raw, k_ref, k_hr, k_cc, k_enc = jax.random.split(key, 5)

    shape = (2, 4, 16, 16)  # (N, C, H, W)
    raw = jax.random.uniform(k_raw, shape, dtype=jnp.float32)
    ref = jax.random.uniform(k_ref, shape, dtype=jnp.float32)
    hr = jax.random.uniform(k_hr, shape, dtype=jnp.float32)
    cc = jax.random.uniform(k_cc, shape, dtype=jnp.float32)
    enc = jax.random.uniform(k_enc, shape, dtype=jnp.float32)

    loss = hr_loss_forward(raw, ref, hr, cc, enc, loss_weight=1.0)
    loss = jax.block_until_ready(loss)

    # Sanity check against a pure-JAX reference of the same semantics.
    ref_loss = jnp.mean(jnp.abs(hr - ref))
    assert jnp.allclose(loss, ref_loss, atol=1e-5, rtol=1e-5), (loss, ref_loss)

    print("KERNEL_OK")
</pallas_src>

<mosaic_0001>
module attributes {stable_mosaic.version = 11 : i64} {
  func.func @kernel(%arg0: i32, %arg1: i32, %arg2: memref<8x256xf32, #tpu.memory_space<vmem>>, %arg3: memref<8x256xf32, #tpu.memory_space<vmem>>, %arg4: memref<1x8x128xf32, #tpu.memory_space<vmem>>, %arg5: memref<8x256xf32, #tpu.memory_space<vmem>>) attributes {dimension_semantics = [#tpu.dimension_semantics<parallel>, #tpu.dimension_semantics<arbitrary>], iteration_bounds = array<i64: 1, 1>, scalar_prefetch = 0 : i64, scratch_operands = 1 : i64, tpu.core_type = #tpu.core_type<tc>, window_params = [{transform_indices = @transform_0, window_bounds = array<i64: 8, 256>}, {transform_indices = @transform_1, window_bounds = array<i64: 8, 256>}, {transform_indices = @transform_2, window_bounds = array<i64: 1, 8, 128>}]} {
    %c0_i32 = arith.constant 0 : i32
    %0 = arith.cmpi eq, %arg1, %c0_i32 : i32
    %1 = arith.extui %0 : i1 to i32
    %c0_i32_0 = arith.constant 0 : i32
    %2 = arith.cmpi ne, %1, %c0_i32_0 : i32
    scf.if %2 {
      %cst = arith.constant 0.000000e+00 : f32
      %13 = vector.broadcast %cst : f32 to vector<8x256xf32>
      %c0_10 = arith.constant 0 : index
      %c0_11 = arith.constant 0 : index
      %14 = vector.load %arg5[%c0_10, %c0_11] : memref<8x256xf32, #tpu.memory_space<vmem>>, vector<8x256xf32>
      tpu.vector_store %arg5[%c0_10, %c0_11], %13 {strides = array<i32>} : memref<8x256xf32, #tpu.memory_space<vmem>>, vector<8x256xf32>,
    } else {
    }
    %c0 = arith.constant 0 : index
    %c0_1 = arith.constant 0 : index
    %3 = vector.load %arg2[%c0, %c0_1] : memref<8x256xf32, #tpu.memory_space<vmem>>, vector<8x256xf32>
    %c0_2 = arith.constant 0 : index
    %c0_3 = arith.constant 0 : index
    %4 = vector.load %arg3[%c0_2, %c0_3] : memref<8x256xf32, #tpu.memory_space<vmem>>, vector<8x256xf32>
    %5 = arith.subf %3, %4 : vector<8x256xf32>
    %6 = math.absf %5 : vector<8x256xf32>
    %c0_4 = arith.constant 0 : index
    %c0_5 = arith.constant 0 : index
    %7 = vector.load %arg5[%c0_4, %c0_5] : memref<8x256xf32, #tpu.memory_space<vmem>>, vector<8x256xf32>
    %8 = arith.addf %7, %6 : vector<8x256xf32>
    %c0_6 = arith.constant 0 : index
    %c0_7 = arith.constant 0 : index
    %9 = vector.load %arg5[%c0_6, %c0_7] : memref<8x256xf32, #tpu.memory_space<vmem>>, vector<8x256xf32>
    tpu.vector_store %arg5[%c0_6, %c0_7], %8 {strides = array<i32>} : memref<8x256xf32, #tpu.memory_space<vmem>>, vector<8x256xf32>,
    %c0_i32_8 = arith.constant 0 : i32
    %10 = arith.cmpi eq, %arg1, %c0_i32_8 : i32
    %11 = arith.extui %10 : i1 to i32
    %c0_i32_9 = arith.constant 0 : i32
    %12 = arith.cmpi ne, %11, %c0_i32_9 : i32
    scf.if %12 {
      %c0_10 = arith.constant 0 : index
      %c0_11 = arith.constant 0 : index
      %13 = vector.load %arg5[%c0_10, %c0_11] : memref<8x256xf32, #tpu.memory_space<vmem>>, vector<8x256xf32>
      %14 = vector.shape_cast %13 : vector<8x256xf32> to vector<1x8x256xf32>
      %cst = arith.constant dense<0.000000e+00> : vector<1xf32>
      %15 = vector.multi_reduction <add>, %14, %cst [1, 2] : vector<1x8x256xf32> to vector<1xf32>
      %16 = vector.shape_cast %15 : vector<1xf32> to vector<1x1x1xf32>
      %17 = vector.extract %16[0, 0, 0] : f32 from vector<1x1x1xf32>
      %18 = vector.broadcast %17 : f32 to vector<1x8x128xf32>
      %c0_12 = arith.constant 0 : index
      %c0_13 = arith.constant 0 : index
      %c0_14 = arith.constant 0 : index
      %19 = vector.load %arg4[%c0_12, %c0_13, %c0_14] : memref<1x8x128xf32, #tpu.memory_space<vmem>>, vector<1x8x128xf32>
      tpu.vector_store %arg4[%c0_12, %c0_13, %c0_14], %18 {strides = array<i32>} : memref<1x8x128xf32, #tpu.memory_space<vmem>>, vector<1x8x128xf32>,
    } else {
    }
    return
  }
  func.func @transform_0(%arg0: i32, %arg1: i32) -> (i32, i32) {
    %c0_i32 = arith.constant 0 : i32
    return %arg0, %arg1 : i32, i32
  }
  func.func @transform_1(%arg0: i32, %arg1: i32) -> (i32, i32) {
    %c0_i32 = arith.constant 0 : i32
    return %arg0, %arg1 : i32, i32
  }
  func.func @transform_2(%arg0: i32, %arg1: i32) -> (i32, i32, i32) {
    %c0_i32 = arith.constant 0 : i32
    %c0_i32_0 = arith.constant 0 : i32
    %c0_i32_1 = arith.constant 0 : i32
    return %arg0, %c0_i32, %c0_i32_0 : i32, i32, i32
  }
}

</mosaic_0001>

<llo_original>
// kernel: hr_loss_forward.1
$region0: #{hr_loss_forward.1}
  #allocation0 [shape = 'u32[]', space=smem, size = 0x4, offset = 0x4, fixed_abs, tag = 'smem constant byte address 0x4 - core index']
  #allocation1 [shape = 'u32[144,128]{1,0:T(1,128)}', space=vmem, size = 0x12000, scoped, tag = 'internal scratch']
  #allocation2 [shape = 'f32[8,256]{1,0:T(8,128)}', space=vmem, size = 0x2000, scoped, tag = 'scratch operand']
  %s0 = inlined_call_operand.vmem [shape: f32[8,256], index: 0, kind: input, shape index: {}]
  %s1 = inlined_call_operand.vmem [shape: f32[8,256], index: 1, kind: input, shape index: {}]
  %s2 = inlined_call_operand.vmem [shape: f32[1,8,128], index: 2, kind: output, shape index: {}]
  %s3 = sld [smem:[#allocation0]]
  $region26: #{hr_loss_forward.1} parent=0
    _
  %s5 = ssub.s32 1, %s3
  %s6 = scalar_select 0, %s5, %s3
  // Predicated region
  $region2: #{hr_loss_forward.1} parent=0 // pred_check
    _
  $region3: #{hr_loss_forward.1} parent=0 // pred_check_branch
    %8 = sbr.rel (0) target = $region5
  $region4: #{hr_loss_forward.1} parent=0 // pred_region
    _
  $region5: #{hr_loss_forward.1} parent=0 // pred_fallthru
    _
  // Predicated region
  $region6: #{hr_loss_forward.1} parent=0 // pred_check
    _
  $region7: #{hr_loss_forward.1} parent=0 // pred_check_branch
    %10 = sbr.rel (0) target = $region9
  $region8: #{hr_loss_forward.1} parent=0 // pred_region
    _
  $region9: #{hr_loss_forward.1} parent=0 // pred_fallthru
    _
  %p11 = scmp.eq.s32.totalorder 0, 0
  // Predicated region
  $region10: #{hr_loss_forward.1} parent=0 // pred_check
    %p12 = pneg %p11
  $region11: #{hr_loss_forward.1} parent=0 // pred_check_branch
    %14 = sbr.rel (%p12) target = $region13
  $region12: #{hr_loss_forward.1} parent=0 // pred_region
    %15 = vst [vmem:[#allocation2] sm:$0xff] 0.0
    %16 = vst [vmem:[#allocation2 + $0x8] sm:$0xff] 0.0
  $region13: #{hr_loss_forward.1} parent=0 // pred_fallthru
    _
  %v17 = vld [vmem:[%s0] sm:$0xff]
  %v18 = vld [vmem:[%s0 + $0x8] sm:$0xff]
  %v19 = vld [vmem:[%s1] sm:$0xff]
  %v20 = vld [vmem:[%s1 + $0x8] sm:$0xff]
  %v21 = vsub.f32 %v17, %v19
  %v22 = vsub.f32 %v18, %v20
  %v23 = vand.u32 2147483647, %v21
  %v24 = vand.u32 2147483647, %v22
  %v25 = vld [vmem:[#allocation2] sm:$0xff]
  %v26 = vld [vmem:[#allocation2 + $0x8] sm:$0xff]
  %v27 = vadd.f32 %v25, %v23
  %v28 = vadd.f32 %v26, %v24
  %29 = vst [vmem:[#allocation2] sm:$0xff] %v27
  %30 = vst [vmem:[#allocation2 + $0x8] sm:$0xff] %v28
  // Predicated region
  $region14: #{hr_loss_forward.1} parent=0 // pred_check
    %p31 = pneg %p11
  $region15: #{hr_loss_forward.1} parent=0 // pred_check_branch
    %33 = sbr.rel (%p31) target = $region17
  $region16: #{hr_loss_forward.1} parent=0 // pred_region
    %v34 = vld [vmem:[#allocation2] sm:$0xff]
    %v35 = vld [vmem:[#allocation2 + $0x8] sm:$0xff]
    %v36 = vadd.f32 %v34, %v35
    %37 = vadd.xlane.f32.xlu0 %v36
    %v38 = vpop.xlane.xlu0 %37
    %v39 = vrot.slane %v38, 4
    %v40 = vadd.f32 %v38, %v39
    %v41 = vrot.slane %v40, 2
    %v42 = vadd.f32 %v40, %v41
    %v43 = vrot.slane %v42, 1
    %v44 = vadd.f32 %v42, %v43
    %s45 = vtos %v44
    %v46 = vstv %s45
    %47 = vst [vmem:[%s2] sm:$0xff] %v46
  $region17: #{hr_loss_forward.1} parent=0 // pred_fallthru
    _
  // Predicated region
  $region18: #{hr_loss_forward.1} parent=0 // pred_check
    _
  $region19: #{hr_loss_forward.1} parent=0 // pred_check_branch
    %49 = sbr.rel (0) target = $region21
  $region20: #{hr_loss_forward.1} parent=0 // pred_region
    _
  $region21: #{hr_loss_forward.1} parent=0 // pred_fallthru
    _
  // Predicated region
  $region22: #{hr_loss_forward.1} parent=0 // pred_check
    _
  $region23: #{hr_loss_forward.1} parent=0 // pred_check_branch
    %51 = sbr.rel (0) target = $region25
  $region24: #{hr_loss_forward.1} parent=0 // pred_region
    _
  $region25: #{hr_loss_forward.1} parent=0 // pred_fallthru
    _

</llo_original>
